<compile_context>
chip_gen: v7x
topology: tpu7x:2x2x1
jax: 0.10.0
libtpu: 0.0.40
codegen_flags: <defaults>
</compile_context>

<pallas_src>
import jax
import jax.numpy as jnp
from jax.experimental import pallas as pl
from jax.experimental.pallas import tpu as pltpu


def _round_up(v, m):
    return (v + m - 1) // m * m


def _sublane(dtype):
    # sublane packing: 8 for 32-bit, 16 for bf16, 32 for int8/fp8
    return max(8, 32 // jnp.dtype(dtype).itemsize)


def _vmem_capacity_bytes():
    try:
        info = pltpu.get_tpu_info()
        cap = int(getattr(info, "vmem_capacity_bytes", 0) or 0)
        if cap > 0:
            return cap
    except Exception:
        pass
    return 64 << 20  # conservative fallback (v7x per-TC VMEM)


def _hyperconv2d_kernel(p_ref, w_ref, b_ref, o_ref):
    # p_ref: (Bt, Kc, THW)  im2col patches, lane-dense spatial axis
    # w_ref: (Bt, C2, Kc)   flattened per-sample weights
    # b_ref: (Bt, C2, 1)    per-sample bias (f32)
    # o_ref: (Bt, C2, THW)  lane-dense output
    acc = jnp.einsum("bck,bkh->bch", w_ref[...], p_ref[...],
                     preferred_element_type=jnp.float32)
    acc = acc + b_ref[...].astype(jnp.float32)
    o_ref[...] = acc.astype(o_ref.dtype)


def hyper_conv2d(x, conv_weight, conv_bias, *, stride=1, padding=1,
                 dilation=1, groups=1, padding_mode="zeros",
                 operand_dtype=None):
    """Pallas implementation of HyperConv2d.forward (per-sample conv2d).

    x:           (N, C1, H, W)        NCHW, like PyTorch
    conv_weight: (N, C2, C1, K, K)    per-sample conv weights
    conv_bias:   (N, C2) or None      per-sample bias
    operand_dtype: optional dtype (e.g. jnp.bfloat16) for the matmul operands;
                 accumulation stays f32 and the output keeps x.dtype.
    returns:     (N, C2, H_out, W_out)
    """
    assert isinstance(stride, int) and stride >= 1, (
        "fractional stride (conv_transpose2d branch) not implemented")
    assert groups == 1, "groups != 1 not implemented"
    # TODO(synk): the fractional-stride conv_transpose2d branch and groups != 1
    # of the original module are not implemented.

    N, C1, H, W = x.shape
    _, C2, _, K, K2 = conv_weight.shape
    assert K == K2, "only square kernels supported"

    out_dtype = x.dtype
    op_dtype = jnp.dtype(operand_dtype) if operand_dtype is not None else jnp.dtype(x.dtype)

    # Non-zero padding modes: pre-pad (same as the PyTorch module) then conv
    # with zero extra padding.
    if padding_mode != "zeros":
        mode = {"reflect": "reflect", "replicate": "edge",
                "circular": "wrap"}[padding_mode]
        x = jnp.pad(x, ((0, 0), (0, 0), (padding, padding),
                        (padding, padding)), mode=mode)
        pad = 0
    else:
        pad = padding

    _, _, Hx, Wx = x.shape
    H_out = (Hx + 2 * pad - dilation * (K - 1) - 1) // stride + 1
    W_out = (Wx + 2 * pad - dilation * (K - 1) - 1) // stride + 1
    HW = H_out * W_out
    Kc = C1 * K * K

    # ---------------- generation-aware tile / VMEM budget selection ----------
    cap = _vmem_capacity_bytes()
    budget = int(min(max(cap // 2 - (8 << 20), 16 << 20), 64 << 20))

    itm = op_dtype.itemsize
    out_itm = jnp.dtype(out_dtype).itemsize
    sub = _sublane(op_dtype)
    sub_out = _sublane(out_dtype)

    def per_sample_bytes(t):
        t128 = _round_up(max(t, 1), 128)
        return 2 * (itm * (_round_up(Kc, sub) * t128              # patches
                           + _round_up(C2, sub) * _round_up(Kc, 128)  # weights
                           + _round_up(C2, sub) * 128)             # bias
                    + out_itm * _round_up(C2, sub_out) * t128)     # output

    # Spatial (lane) tile: derive the max lane count from the VMEM budget
    # (half the budget if N > 1 so the batch tile can also grow), cap for DMA
    # granularity.
    spatial_budget = budget if N == 1 else budget // 2
    fixed = 2 * itm * (_round_up(C2, sub) * _round_up(Kc, 128)
                       + _round_up(C2, sub) * 128)
    slope = 2 * (itm * _round_up(Kc, sub) + out_itm * _round_up(C2, sub_out))
    max_lanes = max(128, min(16384, (spatial_budget - fixed) // slope))

    if HW <= max_lanes:
        THW = HW
    else:
        THW = (max_lanes // 128) * 128
    if THW % 128 != 0:
        THW = _round_up(THW, 128)          # lane-dense, unmasked stores
    HW_pad = _round_up(HW, THW)
    n_spatial = HW_pad // THW

    # Guarantee >= 2 total grid steps (both v7x TensorCores / megacore busy).
    if N * n_spatial < 2 and THW > 128:
        THW = _round_up(pl.cdiv(THW, 2), 128)
        HW_pad = _round_up(HW, THW)
        n_spatial = HW_pad // THW

    ps = per_sample_bytes(THW)
    # Batch tile: largest divisor of N within budget; only require >= 2 TOTAL
    # grid steps (batch steps * spatial steps), not >= 2 per axis.
    Bt = 1
    for bt in range(1, N + 1):
        if N % bt:
            continue
        if bt > 1 and bt * ps > budget:
            continue
        if (N // bt) * n_spatial < 2 and N * n_spatial >= 2:
            continue
        Bt = bt

    working = Bt * ps
    vmem_limit = int(min(max(working * 5 // 4 + (2 << 20), 16 << 20),
                         int(cap * 0.9)))

    # ---------------- im2col (plain-JAX glue, fusible producer) --------------
    x_pad = jnp.pad(x, ((0, 0), (0, 0), (pad, pad), (pad, pad)))
    cols = []
    for kh in range(K):
        for kw in range(K):
            h0 = kh * dilation
            w0 = kw * dilation
            cols.append(
                x_pad[:, :,
                      h0:h0 + (H_out - 1) * stride + 1:stride,
                      w0:w0 + (W_out - 1) * stride + 1:stride])
    # (N, C1*K*K, HW) with (c1, kh, kw) ordering along the contraction axis.
    patches = jnp.stack(cols, axis=2).reshape(N, Kc, HW).astype(op_dtype)
    if HW_pad != HW:
        patches = jnp.pad(patches, ((0, 0), (0, 0), (0, HW_pad - HW)))

    # Weights flattened with the same (c1, kh, kw) ordering; bias stays f32.
    w_flat = conv_weight.reshape(N, C2, Kc).astype(op_dtype)
    if conv_bias is None:
        bias = jnp.zeros((N, C2, 1), jnp.float32)
    else:
        bias = conv_bias.reshape(N, C2, 1).astype(jnp.float32)

    cost = pl.CostEstimate(
        flops=2 * N * C2 * Kc * HW,
        transcendentals=0,
        bytes_accessed=int(patches.size * itm + w_flat.size * itm
                           + bias.size * 4 + N * C2 * HW_pad * out_itm))

    grid = (N // Bt, n_spatial)

    out = pl.pallas_call(
        _hyperconv2d_kernel,
        out_shape=jax.ShapeDtypeStruct((N, C2, HW_pad), out_dtype),
        grid_spec=pltpu.PrefetchScalarGridSpec(
            num_scalar_prefetch=0,
            grid=grid,
            in_specs=[
                pl.BlockSpec((Bt, Kc, THW), lambda i, j: (i, 0, j)),
                pl.BlockSpec((Bt, C2, Kc), lambda i, j: (i, 0, 0)),
                pl.BlockSpec((Bt, C2, 1), lambda i, j: (i, 0, 0)),
            ],
            out_specs=pl.BlockSpec((Bt, C2, THW), lambda i, j: (i, 0, j)),
        ),
        compiler_params=pltpu.CompilerParams(
            dimension_semantics=("parallel", "parallel"),
            vmem_limit_bytes=vmem_limit,
            allow_input_fusion=[True, False, False]),
        cost_estimate=cost,
    )(patches, w_flat, bias)

    if HW_pad != HW:
        out = out[:, :, :HW]
    # Free reshape (no transpose): (N, C2, HW) -> (N, C2, H_out, W_out).
    return out.reshape(N, C2, H_out, W_out)


def _reference_hyper_conv2d(x, conv_weight, conv_bias, padding=1):
    """Pure-JAX (lax) per-sample conv reference, mirrors the PyTorch loop."""
    outs = []
    for i in range(x.shape[0]):
        yi = jax.lax.conv_general_dilated(
            x[i:i + 1], conv_weight[i],
            window_strides=(1, 1),
            padding=((padding, padding), (padding, padding)),
            dimension_numbers=("NCHW", "OIHW", "NCHW"))
        yi = yi + conv_bias[i][None, :, None, None]
        outs.append(yi)
    return jnp.concatenate(outs, axis=0)


if __name__ == "__main__":
    # Small shapes consistent with the module: N x C1 x H x W input,
    # N x C2 x C1 x k x k per-sample weights, N x C2 per-sample bias.
    N, C1, C2, H, W, K = 2, 4, 8, 16, 16, 3

    key = jax.random.PRNGKey(0)
    kx, kw, kb = jax.random.split(key, 3)
    x = jax.random.normal(kx, (N, C1, H, W), jnp.float32)
    conv_weight = jax.random.normal(kw, (N, C2, C1, K, K), jnp.float32) * 0.1
    conv_bias = jax.random.normal(kb, (N, C2), jnp.float32) * 0.1

    y = hyper_conv2d(x, conv_weight, conv_bias, stride=1, padding=1)
    y = jax.block_until_ready(y)

    y_ref = _reference_hyper_conv2d(x, conv_weight, conv_bias, padding=1)
    assert y.shape == (N, C2, H, W), y.shape
    assert jnp.allclose(y, y_ref, atol=1e-4, rtol=1e-4), (
        float(jnp.max(jnp.abs(y - y_ref))))

    print("KERNEL_OK")
</pallas_src>

<mosaic_0001>
module attributes {stable_mosaic.version = 11 : i64} {
  func.func @_hyperconv2d_kernel(%arg0: i32, %arg1: i32, %arg2: memref<1x36x256xf32, #tpu.memory_space<vmem>>, %arg3: memref<1x8x36xf32, #tpu.memory_space<vmem>>, %arg4: memref<1x8x1xf32, #tpu.memory_space<vmem>>, %arg5: memref<1x8x256xf32, #tpu.memory_space<vmem>>) attributes {dimension_semantics = [#tpu.dimension_semantics<parallel>, #tpu.dimension_semantics<parallel>], iteration_bounds = array<i64: 2, 1>, scalar_prefetch = 0 : i64, scratch_operands = 0 : i64, tpu.core_type = #tpu.core_type<tc>, window_params = [{transform_indices = @transform_0, window_bounds = array<i64: 1, 36, 256>}, {transform_indices = @transform_1, window_bounds = array<i64: 1, 8, 36>}, {transform_indices = @transform_2, window_bounds = array<i64: 1, 8, 1>}, {transform_indices = @transform_3, window_bounds = array<i64: 1, 8, 256>}]} {
    %c0 = arith.constant 0 : index
    %c0_0 = arith.constant 0 : index
    %c0_1 = arith.constant 0 : index
    %0 = vector.load %arg3[%c0, %c0_0, %c0_1] : memref<1x8x36xf32, #tpu.memory_space<vmem>>, vector<1x8x36xf32>
    %c0_2 = arith.constant 0 : index
    %c0_3 = arith.constant 0 : index
    %c0_4 = arith.constant 0 : index
    %1 = vector.load %arg2[%c0_2, %c0_3, %c0_4] : memref<1x36x256xf32, #tpu.memory_space<vmem>>, vector<1x36x256xf32>
    "tpu.trace_start"() <{level = 10 : i32, message = "bck,bkh->bch"}> : () -> ()
    %cst = arith.constant dense<0.000000e+00> : vector<1x8x256xf32>
    %2 = tpu.matmul %0, %1, %cst {dimension_numbers = #tpu.dot_dimension_numbers<[2], [1], [1], [2], [0, 0, 0, 1, 1, 2], [0], [0]>} : vector<1x8x36xf32>, vector<1x36x256xf32>, vector<1x8x256xf32> -> vector<1x8x256xf32>
    "tpu.trace_stop"() : () -> ()
    %c0_5 = arith.constant 0 : index
    %c0_6 = arith.constant 0 : index
    %c0_7 = arith.constant 0 : index
    %3 = vector.load %arg4[%c0_5, %c0_6, %c0_7] : memref<1x8x1xf32, #tpu.memory_space<vmem>>, vector<1x8x1xf32>
    %4 = vector.broadcast %3 : vector<1x8x1xf32> to vector<1x8x256xf32>
    %5 = arith.addf %2, %4 : vector<1x8x256xf32>
    %c0_8 = arith.constant 0 : index
    %c0_9 = arith.constant 0 : index
    %c0_10 = arith.constant 0 : index
    %6 = vector.load %arg5[%c0_8, %c0_9, %c0_10] : memref<1x8x256xf32, #tpu.memory_space<vmem>>, vector<1x8x256xf32>
    tpu.vector_store %arg5[%c0_8, %c0_9, %c0_10], %5 {strides = array<i32>} : memref<1x8x256xf32, #tpu.memory_space<vmem>>, vector<1x8x256xf32>,
    return
  }
  func.func @transform_0(%arg0: i32, %arg1: i32) -> (i32, i32, i32) {
    %c0_i32 = arith.constant 0 : i32
    %c0_i32_0 = arith.constant 0 : i32
    return %arg0, %c0_i32, %arg1 : i32, i32, i32
  }
  func.func @transform_1(%arg0: i32, %arg1: i32) -> (i32, i32, i32) {
    %c0_i32 = arith.constant 0 : i32
    %c0_i32_0 = arith.constant 0 : i32
    %c0_i32_1 = arith.constant 0 : i32
    return %arg0, %c0_i32, %c0_i32_0 : i32, i32, i32
  }
  func.func @transform_2(%arg0: i32, %arg1: i32) -> (i32, i32, i32) {
    %c0_i32 = arith.constant 0 : i32
    %c0_i32_0 = arith.constant 0 : i32
    %c0_i32_1 = arith.constant 0 : i32
    return %arg0, %c0_i32, %c0_i32_0 : i32, i32, i32
  }
  func.func @transform_3(%arg0: i32, %arg1: i32) -> (i32, i32, i32) {
    %c0_i32 = arith.constant 0 : i32
    %c0_i32_0 = arith.constant 0 : i32
    return %arg0, %c0_i32, %arg1 : i32, i32, i32
  }
}

</mosaic_0001>

<llo_original>
// kernel: tpu_custom_call.1
$region0: #{tpu_custom_call.1}
  #allocation0 [shape = 'u32[]', space=smem, size = 0x4, offset = 0x4, fixed_abs, tag = 'smem constant byte address 0x4 - core index']
  #allocation1 [shape = 'u32[144,128]{1,0:T(1,128)}', space=vmem, size = 0x12000, scoped, tag = 'internal scratch']
  %s0 = inlined_call_operand.vmem [shape: f32[2,36,256], index: 0, kind: input, shape index: {}]
  %s1 = inlined_call_operand.vmem [shape: f32[2,8,36], index: 1, kind: input, shape index: {}]
  %s2 = inlined_call_operand.vmem [shape: f32[2,8,1], index: 2, kind: input, shape index: {}]
  %s3 = inlined_call_operand.hbm [shape: f32[2,8,256], index: 3, kind: output, shape index: {}]
  %s4 = sld [smem:[#allocation0]]
  $region45: #{tpu_custom_call.1} parent=0
    _
  %s6 = ssub.s32 1, %s4
  %s7 = scalar_select 0, %s6, %s4
  $region1: #{tpu_custom_call.1} parent=0
    #allocation2 [shape = 'u8[16384]{0}', space=vmem, size = 0x4000, scoped, tag = 'output window, operand 0']
    #allocation3 [shape = 's32[2]{0}', space=sflag, size = 0x8, scoped, tag = 'scoped memory for tpu_custom_call.1']
    %8 = vsyncpa [#allocation3], 0
    %s9 = scalar_lea.sflag [#allocation3], 1
    %10 = vsyncpa %s9, 0
    loop: start=0, step=1, limit=4
    $region2: #{tpu_custom_call.1} parent=1 // loop_pre_header
      _
    $region3: #{tpu_custom_call.1} parent=1 // loop_header
      %s12 = sphi 0, %s16
      %p13 = scmp.ge.s32.totalorder %s12, 4
      %s19 = sphi 0, %s31
      %s20 = sphi 0, %s27
      %s21 = sphi 0, %s19
      %s22 = sphi 0, %s20
      %s23 = sphi 0, %s21
      %s24 = sphi 0, %s22
      %s36 = sphi 0, %s38
      %s39 = sphi 0, %s36
      %s40 = sphi 0, %s39
      %s56 = sphi 0, %s40
      %s62 = sphi 0, %s64
      %s65 = sphi 0, %s62
      %s66 = sphi 0, %s65
      %s82 = sphi 0, %s66
      %s88 = sphi 0, %s90
      %s91 = sphi 0, %s88
      %s92 = sphi 0, %s91
      %s108 = sphi 0, %s92
      %s116 = sphi 0, %s118
      %s119 = sphi 0, %s116
      %s120 = sphi 0, %s119
      %s136 = sphi 0, %s120
    $region4: #{tpu_custom_call.1} parent=1 // loop_header_branch
      %15 = sbr.rel (%p13) target = $region8
    $region5: #{tpu_custom_call.1} parent=1 // loop_body
      %s17 = ssub.s32 %s12, 1
      %s18 = ssub.s32 %s12, 2
      %s25 = sadd.s32 1, %s20
      %p26 = scmp.ge.s32.totalorder %s25, 1
      %s27 = scalar_select %p26, 0, %s25
      %s28 = sadd.s32 1, %s19
      %s29 = scalar_select %p26, %s28, %s19
      %p30 = scmp.ge.s32.totalorder %s29, 2
      %s31 = scalar_select %p30, 0, %s29
      %s32 = ssub.s32 %s19, %s31
      %s33 = ssub.s32 %s20, %s27
      %s34 = sor.u32 %s32, %s33
      %p35 = scmp.eq.s32.totalorder %s34, 0
      %s37 = sadd.s32 %s36, 1
      %s38 = scalar_select %p35, %s36, %s37
      %p41 = pneg %p35
      %p42 = scmp.eq.s32.totalorder %s12, 1
      %p43 = por %p41, %p42
      %p44 = scmp.ne.s32.totalorder %s36, %s39
      %p45 = scmp.eq.s32.totalorder %s12, 0
      %p46 = por %p44, %p45
      %p47 = scmp.ne.s32.totalorder %s36, %s39
      %p48 = scmp.eq.s32.totalorder %s17, 1
      %p49 = por %p47, %p48
      %p50 = scmp.ne.s32.totalorder %s39, %s40
      %p51 = scmp.eq.s32.totalorder %s17, 0
      %p52 = por %p50, %p51
      %p53 = scmp.ne.s32.totalorder %s39, %s40
      %p54 = scmp.eq.s32.totalorder %s18, 1
      %p55 = por %p53, %p54
      %p57 = scmp.ne.s32.totalorder %s40, %s56
      %p58 = scmp.eq.s32.totalorder %s18, 0
      %p59 = por %p57, %p58
      %s60 = ssub.s32 %s19, %s31
      %p61 = scmp.eq.s32.totalorder %s60, 0
      %s63 = sadd.s32 %s62, 1
      %s64 = scalar_select %p61, %s62, %s63
      %p67 = pneg %p61
      %p68 = scmp.eq.s32.totalorder %s12, 1
      %p69 = por %p67, %p68
      %p70 = scmp.ne.s32.totalorder %s62, %s65
      %p71 = scmp.eq.s32.totalorder %s12, 0
      %p72 = por %p70, %p71
      %p73 = scmp.ne.s32.totalorder %s62, %s65
      %p74 = scmp.eq.s32.totalorder %s17, 1
      %p75 = por %p73, %p74
      %p76 = scmp.ne.s32.totalorder %s65, %s66
      %p77 = scmp.eq.s32.totalorder %s17, 0
      %p78 = por %p76, %p77
      %p79 = scmp.ne.s32.totalorder %s65, %s66
      %p80 = scmp.eq.s32.totalorder %s18, 1
      %p81 = por %p79, %p80
      %p83 = scmp.ne.s32.totalorder %s66, %s82
      %p84 = scmp.eq.s32.totalorder %s18, 0
      %p85 = por %p83, %p84
      %s86 = ssub.s32 %s19, %s31
      %p87 = scmp.eq.s32.totalorder %s86, 0
      %s89 = sadd.s32 %s88, 1
      %s90 = scalar_select %p87, %s88, %s89
      %p93 = pneg %p87
      %p94 = scmp.eq.s32.totalorder %s12, 1
      %p95 = por %p93, %p94
      %p96 = scmp.ne.s32.totalorder %s88, %s91
      %p97 = scmp.eq.s32.totalorder %s12, 0
      %p98 = por %p96, %p97
      %p99 = scmp.ne.s32.totalorder %s88, %s91
      %p100 = scmp.eq.s32.totalorder %s17, 1
      %p101 = por %p99, %p100
      %p102 = scmp.ne.s32.totalorder %s91, %s92
      %p103 = scmp.eq.s32.totalorder %s17, 0
      %p104 = por %p102, %p103
      %p105 = scmp.ne.s32.totalorder %s91, %s92
      %p106 = scmp.eq.s32.totalorder %s18, 1
      %p107 = por %p105, %p106
      %p109 = scmp.ne.s32.totalorder %s92, %s108
      %p110 = scmp.eq.s32.totalorder %s18, 0
      %p111 = por %p109, %p110
      %s112 = ssub.s32 %s19, %s31
      %s113 = ssub.s32 %s20, %s27
      %s114 = sor.u32 %s112, %s113
      %p115 = scmp.eq.s32.totalorder %s114, 0
      %s117 = sadd.s32 %s116, 1
      %s118 = scalar_select %p115, %s116, %s117
      %p121 = pneg %p115
      %p122 = scmp.eq.s32.totalorder %s12, 1
      %p123 = por %p121, %p122
      %p124 = scmp.ne.s32.totalorder %s116, %s119
      %p125 = scmp.eq.s32.totalorder %s12, 0
      %p126 = por %p124, %p125
      %p127 = scmp.ne.s32.totalorder %s116, %s119
      %p128 = scmp.eq.s32.totalorder %s17, 1
      %p129 = por %p127, %p128
      %p130 = scmp.ne.s32.totalorder %s119, %s120
      %p131 = scmp.eq.s32.totalorder %s17, 0
      %p132 = por %p130, %p131
      %p133 = scmp.ne.s32.totalorder %s119, %s120
      %p134 = scmp.eq.s32.totalorder %s18, 1
      %p135 = por %p133, %p134
      %p137 = scmp.ne.s32.totalorder %s120, %s136
      %p138 = scmp.eq.s32.totalorder %s18, 0
      %p139 = por %p137, %p138
      %p140 = scmp.le.s32.totalorder 1, %s12
      %p141 = scmp.lt.s32.totalorder %s12, 3
      %p142 = pnand %p140, %p141
      %p143 = pneg %p142
      // Predicated region
      $region9: #{tpu_custom_call.1} parent=5 // pred_check
        _
      $region10: #{tpu_custom_call.1} parent=5 // pred_check_branch
        %145 = sbr.rel (%p142) target = $region12
      $region11: #{tpu_custom_call.1} parent=5 // pred_region
        %s146 = ssub.s32 %s12, 1
      $region12: #{tpu_custom_call.1} parent=5 // pred_fallthru
        _
      %p147 = scmp.lt.s32.totalorder %s12, 2
      // Predicated region
      $region13: #{tpu_custom_call.1} parent=5 // pred_check
        %p148 = pneg %p147
      $region14: #{tpu_custom_call.1} parent=5 // pred_check_branch
        %150 = sbr.rel (%p148) target = $region16
      $region15: #{tpu_custom_call.1} parent=5 // pred_region
        // Predicated region
        $region17: #{tpu_custom_call.1} parent=15 // pred_check
          %p151 = pneg %p46
        $region18: #{tpu_custom_call.1} parent=15 // pred_check_branch
          %153 = sbr.rel (%p151) target = $region20
        $region19: #{tpu_custom_call.1} parent=15 // pred_region
          %s154 = smul.u32 2, %s20
          %p155 = scmp.lt.s32.totalorder %s19, 1
          %s156 = scalar_select %p155, %s19, 1
          %p157 = scmp.lt.s32.totalorder %s154, 1
          %s158 = scalar_select %p157, %s154, 1
          %s159 = smul.addr %s156, 10
          %s160 = sadd.s32 %s158, %s159
          %s161 = smul.addr %s160, 8
          %s162 = scalar_lea.vmem %s0, %s161
          %s163 = smul.u32 2, %s20
        $region20: #{tpu_custom_call.1} parent=15 // pred_fallthru
          _
        // Predicated region
        $region21: #{tpu_custom_call.1} parent=15 // pred_check
          %p164 = pneg %p72
        $region22: #{tpu_custom_call.1} parent=15 // pred_check_branch
          %166 = sbr.rel (%p164) target = $region24
        $region23: #{tpu_custom_call.1} parent=15 // pred_region
          %p167 = scmp.lt.s32.totalorder %s19, 1
          %s168 = scalar_select %p167, %s19, 1
          %s169 = smul.addr %s168, 8
          %s170 = scalar_lea.vmem %s1, %s169
        $region24: #{tpu_custom_call.1} parent=15 // pred_fallthru
          _
        // Predicated region
        $region25: #{tpu_custom_call.1} parent=15 // pred_check
          %p171 = pneg %p98
        $region26: #{tpu_custom_call.1} parent=15 // pred_check_branch
          %173 = sbr.rel (%p171) target = $region28
        $region27: #{tpu_custom_call.1} parent=15 // pred_region
          %p174 = scmp.lt.s32.totalorder %s19, 1
          %s175 = scalar_select %p174, %s19, 1
          %s176 = smul.addr %s175, 8
          %s177 = scalar_lea.vmem %s2, %s176
        $region28: #{tpu_custom_call.1} parent=15 // pred_fallthru
          _
      $region16: #{tpu_custom_call.1} parent=5 // pred_fallthru
        _
      %p178 = scmp.le.s32.totalorder 1, %s12
      %p179 = scmp.lt.s32.totalorder %s12, 3
      %p180 = pnand %p178, %p179
      %p181 = pneg %p180
      // Predicated region
      $region29: #{tpu_custom_call.1} parent=5 // pred_check
        _
      $region30: #{tpu_custom_call.1} parent=5 // pred_check_branch
        %183 = sbr.rel (%p180) target = $region32
      $region31: #{tpu_custom_call.1} parent=5 // pred_region
        %s184 = ssub.s32 %s12, 1
        %s185 = smul.u32 2, %s22
        %p186 = scmp.lt.s32.totalorder %s21, 1
        %s187 = scalar_select %p186, %s21, 1
        %p188 = scmp.lt.s32.totalorder %s185, 1
        %s189 = scalar_select %p188, %s185, 1
        %s190 = smul.addr %s187, 10
        %s191 = sadd.s32 %s189, %s190
        %s192 = smul.addr %s191, 8
        %s193 = scalar_lea.vmem %s0, %s192
        %p194 = pneg %p52
        %p195 = pneg %p49
        %p196 = scmp.lt.s32.totalorder %s21, 1
        %s197 = scalar_select %p196, %s21, 1
        %s198 = smul.addr %s197, 8
        %s199 = scalar_lea.vmem %s1, %s198
        %p200 = pneg %p78
        %p201 = pneg %p75
        %p202 = scmp.lt.s32.totalorder %s21, 1
        %s203 = scalar_select %p202, %s21, 1
        %s204 = smul.addr %s203, 8
        %s205 = scalar_lea.vmem %s2, %s204
        %p206 = pneg %p104
        %p207 = pneg %p101
        %p208 = pneg %p132
        %p209 = pneg %p129
        %s210 = sand.u32 %s119, 1
        %s211 = scalar_lea.sflag [#allocation3], %s210
        %s212 = sand.u32 %s119, 1
        %s213 = smul.addr %s212, 16
        %s214 = scalar_lea.vmem [#allocation2], %s213
        %s215 = smul.u32 2, %s22
        %p216 = scmp.lt.s32.totalorder %s21, 1
        %s217 = scalar_select %p216, %s21, 1
        %p218 = scmp.lt.s32.totalorder %s215, 1
        %s219 = scalar_select %p218, %s215, 1
        %s220 = smul.addr %s217, 10
        %s221 = sadd.s32 %s219, %s220
        %s222 = smul.addr %s221, 8
        %s223 = scalar_lea.vmem %s0, %s222
        %s224 = smul.u32 2, %s22
        %p225 = scmp.lt.s32.totalorder %s21, 1
        %s226 = scalar_select %p225, %s21, 1
        %s227 = smul.addr %s226, 8
        %s228 = scalar_lea.vmem %s1, %s227
        %p229 = scmp.lt.s32.totalorder %s21, 1
        %s230 = scalar_select %p229, %s21, 1
        %s231 = smul.addr %s230, 8
        %s232 = scalar_lea.vmem %s2, %s231
        %s233 = smul.u32 2, %s22
        %v234 = vld [vmem:[%s228] sm:$0xff]
        %v235 = vld [vmem:[%s223] sm:$0xff]
        %v236 = vld [vmem:[%s223 + $0x8] sm:$0xff]
        %v237 = vld [vmem:[%s223 + $0x10] sm:$0xff]
        %v238 = vld [vmem:[%s223 + $0x18] sm:$0xff]
        %v239 = vld [vmem:[%s223 + $0x20] sm:$0xff]
        %v240 = vld [vmem:[%s223 + $0x28] sm:$0xff]
        %v241 = vld [vmem:[%s223 + $0x30] sm:$0xff]
        %v242 = vld [vmem:[%s223 + $0x38] sm:$0xff]
        %v243 = vld [vmem:[%s223 + $0x40] sm:$0xf]
        %v244 = vld [vmem:[%s223 + $0x48] sm:$0xf]
        %v245 = vld [vmem:[%s232] sm:$0xff]
        %247 = vset.pattern.permute.xlu0 0
        %248 = vperm.xlu0 %247, %v245
        %v249 = vpop.permute.xlu0 %248
        %vm251 = vcmask 293888
        %v253 = vsel %vm251, %v234, 0
        %vm255 = vcmask 1043456
        %v257 = vsel %vm255, %v243, 0
        %v260 = vsel %vm255, %v244, 0
        %262 = vmatprep.subr.mxu0 %v236
        %263 = vmatpush1.msra.mxu0 %v235
        %264 = vmatprep.subr.mxu0 %v238
        %265 = vmatpush1.msra.mxu0 %v237
        %266 = vmatprep.subr.mxu0 %v240
        %267 = vmatpush1.msra.mxu0 %v239
        %268 = vmatprep.subr.mxu0 %v242
        %269 = vmatpush1.msra.mxu0 %v241
        %270 = vmatprep.subr.mxu0 %v260
        %271 = vmatpush1.msra.mxu0 %v257
        %272 = vmatprep.subr.mxu0 0.0
        %273 = vmatpush1.msra.mxu0 0.0
        %274 = vmatprep.subr.mxu0 0.0
        %275 = vmatpush1.msra.mxu0 0.0
        %276 = vmatprep.subr.mxu0 0.0
        %277 = vmatpush1.msra.mxu0 0.0
        %278 = vmatprep.subr.mxu0 0.0
        %279 = vmatpush1.msra.mxu0 0.0
        %280 = vmatprep.subr.mxu0 0.0
        %281 = vmatpush1.msra.mxu0 0.0
        %282 = vmatprep.subr.mxu0 0.0
        %283 = vmatpush1.msra.mxu0 0.0
        %284 = vmatprep.subr.mxu0 0.0
        %285 = vmatpush1.msra.mxu0 0.0
        %286 = vmatprep.subr.mxu0 0.0
        %287 = vmatpush1.msra.mxu0 0.0
        %288 = vmatprep.subr.mxu0 0.0
        %289 = vmatpush1.msra.mxu0 0.0
        %290 = vmatprep.subr.mxu0 0.0
        %291 = vmatpush1.msra.mxu0 0.0
        %292 = vmatprep.subr.mxu0 0.0
        %293 = vmatpush1.msra.mxu0 0.0
        %294 = vmatprep.subr.mxu0 0.0
        %295 = vmatpush1.msra.mxu0 0.0
        %296 = vmatprep.subr.mxu0 0.0
        %297 = vmatpush1.msra.mxu0 0.0
        %298 = vmatprep.subr.mxu0 0.0
        %299 = vmatpush1.msra.mxu0 0.0
        %300 = vmatprep.subr.mxu0 0.0
        %301 = vmatpush1.msra.mxu0 0.0
        %302 = vmatprep.subr.mxu0 0.0
        %303 = vmatpush1.msra.mxu0 0.0
        %304 = vmatprep.subr.mxu0 0.0
        %305 = vmatpush1.msra.mxu0 0.0
        %306 = vmatprep.subr.mxu0 0.0
        %307 = vmatpush1.msra.mxu0 0.0
        %308 = vmatprep.subr.mxu0 0.0
        %309 = vmatpush1.msra.mxu0 0.0
        %310 = vmatprep.subr.mxu0 0.0
        %311 = vmatpush1.msra.mxu0 0.0
        %312 = vmatprep.subr.mxu0 0.0
        %313 = vmatpush1.msra.mxu0 0.0
        %314 = vmatprep.subr.mxu0 0.0
        %315 = vmatpush1.msra.mxu0 0.0
        %316 = vmatprep.subr.mxu0 0.0
        %317 = vmatpush1.msra.mxu0 0.0
        %318 = vmatprep.subr.mxu0 0.0
        %319 = vmatpush1.msra.mxu0 0.0
        %320 = vmatprep.subr.mxu0 0.0
        %321 = vmatpush1.msra.mxu0 0.0
        %322 = vmatprep.subr.mxu0 0.0
        %323 = vmatpush1.msra.mxu0 0.0
        %324 = vmatprep.subr.mxu0 0.0
        %325 = vmatpush1.msra.mxu0 0.0
        %326 = vmatprep.mubr.f32.mxu0 0.0
        %327 = vmatmul.mubr.f32.gmra.mrb[0].mxu0 %v253
        %v328 = vpop.f32.mrb[0].mxu0
        %v329 = vadd.f32 %v249, %v328
        %v330 = vpop.f32.mrb[0].mxu0
        %v331 = vadd.f32 %v249, %v330
        %332 = vdwg.mxu0
        %333 = vst [vmem:[%s214] sm:$0xff] %v329
        %334 = vst [vmem:[%s214 + $0x8] sm:$0xff] %v331
        %s335 = sand.u32 %s119, 1
        %s336 = scalar_lea.sflag [#allocation3], %s335
        %s337 = sand.u32 %s119, 1
        %s338 = smul.addr %s337, 16
        %s339 = scalar_lea.vmem [#allocation2], %s338
        // Predicated region
        $region33: #{tpu_custom_call.1} parent=31 // pred_check
          %p340 = pneg %p129
        $region34: #{tpu_custom_call.1} parent=31 // pred_check_branch
          %342 = sbr.rel (%p340) target = $region36
        $region35: #{tpu_custom_call.1} parent=31 // pred_region
          %s343 = smul.u32 2, %s22
          %s345 = ssub.s32 256, 256
          %346 = vsyncadd %s336, %s345
          %s347 = smul.addr %s21, 2
          %s348 = sadd.s32 %s343, %s347
          %s349 = smul.addr %s348, 128
          %s350 = scalar_lea.hbm %s3, %s349
          %s352 = sshll.u32 %s339, 4
          %s353 = int_to_ptr.vmem [resolvable:$true] %s352
          %355 = dma.vmem_to_hbm [thread:$0]  %s353, 256, %s350, %s336
        $region36: #{tpu_custom_call.1} parent=31 // pred_fallthru
          _
      $region32: #{tpu_custom_call.1} parent=5 // pred_fallthru
        _
      %p356 = scmp.le.s32.totalorder 2, %s12
      // Predicated region
      $region37: #{tpu_custom_call.1} parent=5 // pred_check
        %p357 = pneg %p356
      $region38: #{tpu_custom_call.1} parent=5 // pred_check_branch
        %359 = sbr.rel (%p357) target = $region40
      $region39: #{tpu_custom_call.1} parent=5 // pred_region
        %s360 = ssub.s32 %s12, 2
        // Predicated region
        $region41: #{tpu_custom_call.1} parent=39 // pred_check
          %p361 = pneg %p135
        $region42: #{tpu_custom_call.1} parent=39 // pred_check_branch
          %363 = sbr.rel (%p361) target = $region44
        $region43: #{tpu_custom_call.1} parent=39 // pred_region
          %s364 = sand.u32 %s120, 1
          %s365 = scalar_lea.sflag [#allocation3], %s364
          %s366 = sand.u32 %s120, 1
          %s367 = smul.addr %s366, 16
          %s368 = scalar_lea.vmem [#allocation2], %s367
          %369 = dma.done %s365, 256
        $region44: #{tpu_custom_call.1} parent=39 // pred_fallthru
          _
      $region40: #{tpu_custom_call.1} parent=5 // pred_fallthru
        _
    $region6: #{tpu_custom_call.1} parent=1 // loop_footer
      %s16 = sadd.s32 1, %s12
    $region7: #{tpu_custom_call.1} parent=1 // loop_footer_branch
      %11 = sbr.rel target = $region3
    $region8: #{tpu_custom_call.1} parent=1 // loop_exit
      _
    %370 = vsyncpa [#allocation3], 1
    %s371 = scalar_lea.sflag [#allocation3], 1
    %372 = vsyncpa %s371, 1

</llo_original>
